<compile_context>
chip_gen: v7x
topology: tpu7x:2x2x1
jax: 0.10.0
libtpu: 0.0.40
codegen_flags: <defaults>
</compile_context>

<pallas_src>
import jax
import jax.numpy as jnp
from jax.experimental import pallas as pl
from jax.experimental.pallas import tpu as pltpu

EPS = 1e-3                        # BatchNorm2d(eps=0.001)
MATMUL_DTYPE = jnp.float32        # flip to jnp.bfloat16 for encoder-scale Cin/Cout
VMEM_LIMIT = 32 * 1024 * 1024     # scoped VMEM limit, safe on v5e/v6e/v7x


# ---------------------------------------------------------------------------
# Tile pickers (budget-driven targets; fall back to the full, always-legal,
# extent when no aligned divisor exists).
# ---------------------------------------------------------------------------
def _pick_lane_tile(total, target):
    """Largest divisor of `total` that is a multiple of 128 and <= target."""
    for t in range(min(total, max(target, 128)), 127, -1):
        if total % t == 0 and t % 128 == 0:
            return t
    return total


def _pick_row_tile(total, target):
    """Largest divisor of `total` that is a multiple of 8 and <= target."""
    for t in range(min(total, max(target, 8)), 7, -1):
        if total % t == 0 and t % 8 == 0:
            return t
    return total


# ---------------------------------------------------------------------------
# Pass 1: per-channel sum / sum-of-squares of y = W @ x  (training-mode BN
# statistics, hoisted out of the fused kernel).  Per-batch partials keep the
# leading grid axis 'parallel' (dual-TC on v7x); the spatial axis accumulates.
# ---------------------------------------------------------------------------
def _stats_kernel(x_ref, w_ref, sum_ref, sq_ref):
    # x_ref: (Cin, ts)   w_ref: (Cout, Cin)   sum/sq: (Cout, 1) per-batch partials
    @pl.when(pl.program_id(1) == 0)
    def _():
        sum_ref[...] = jnp.zeros_like(sum_ref)
        sq_ref[...] = jnp.zeros_like(sq_ref)

    y = jnp.dot(w_ref[...].astype(MATMUL_DTYPE),
                x_ref[...].astype(MATMUL_DTYPE),
                preferred_element_type=jnp.float32)
    sum_ref[...] += jnp.sum(y, axis=1, keepdims=True)
    sq_ref[...] += jnp.sum(y * y, axis=1, keepdims=True)


def _bn_batch_stats(x3, w, vmem_budget):
    """Biased (train-mode) per-channel mean/var of conv(x) = W @ x, NCHW."""
    N, Cin, S = x3.shape
    Cout = w.shape[0]
    ts = _pick_lane_tile(S, vmem_budget // (2 * Cin * 4))
    psum, psq = pl.pallas_call(
        _stats_kernel,
        out_shape=(jax.ShapeDtypeStruct((N, Cout, 1), jnp.float32),
                   jax.ShapeDtypeStruct((N, Cout, 1), jnp.float32)),
        grid=(N, S // ts),
        in_specs=[pl.BlockSpec((None, Cin, ts), lambda n, i: (n, 0, i)),
                  pl.BlockSpec((Cout, Cin), lambda n, i: (0, 0))],
        out_specs=(pl.BlockSpec((None, Cout, 1), lambda n, i: (n, 0, 0)),
                   pl.BlockSpec((None, Cout, 1), lambda n, i: (n, 0, 0))),
        compiler_params=pltpu.CompilerParams(
            dimension_semantics=("parallel", "arbitrary"),
            vmem_limit_bytes=VMEM_LIMIT),
    )(x3, w)
    m = N * S
    total = jnp.sum(psum[..., 0], axis=0)
    total_sq = jnp.sum(psq[..., 0], axis=0)
    mean = total / m
    # NOTE: E[y^2] - E[y]^2 with f32 accumulators; for encoder-scale M a
    # mean-centred second reduction would be numerically safer.
    var = jnp.maximum(total_sq / m - mean * mean, 0.0)
    return mean, var


# ---------------------------------------------------------------------------
# Pass 2a: fused 1x1 conv + BN affine (no unpool).  NCHW-native, lane dim is
# the flattened spatial axis (>=128 wide), single dense store per tile.
# ---------------------------------------------------------------------------
def _conv_affine_kernel(x_ref, w_ref, shift_ref, o_ref):
    # x_ref: (Cin, ts)  w_ref: (Cout, Cin) (BN scale pre-folded)  shift: (Cout, 1)
    y = jnp.dot(w_ref[...].astype(MATMUL_DTYPE),
                x_ref[...].astype(MATMUL_DTYPE),
                preferred_element_type=jnp.float32)
    o_ref[...] = (y + shift_ref[...]).astype(o_ref.dtype)


# ---------------------------------------------------------------------------
# Pass 2b: fused 1x1 conv + BN affine + MaxUnpool2d(2, 2).
# Output is written through the free view (N, Cout, H, 4W) of (N, Cout, 2H, 2W)
# so every store is a contiguous, lane-dense (Cout, 4W) row.  The even/odd
# column interleave is produced by one-hot expansion matmuls (exact in f32),
# keeping all ops 2-D -- no in-kernel relayout reshapes.
# ---------------------------------------------------------------------------
def _conv_affine_unpool_kernel(x_ref, w_ref, shift_ref, code_ref, e_ref, o_ref):
    # x_ref:    (Cin, th, W)
    # w_ref:    (Cout, Cin)   BN scale pre-folded
    # shift_ref:(Cout, 1)
    # code_ref: (Cout, th, W) int8, value = 2*dh + dw of the max location
    # e_ref:    (4, W, 4W) f32 one-hot placement: e[2dh+dw, w, 2W*dh + 2w + dw] = 1
    # o_ref:    (Cout, th, 4W) -- NCHW output (N,Cout,2H,2W) viewed as (N,Cout,H,4W)
    th = x_ref.shape[1]
    wmat = w_ref[...].astype(MATMUL_DTYPE)
    shift = shift_ref[...]
    codes = code_ref[...].astype(jnp.int32)            # whole-block i8 -> i32 once
    e_mats = [e_ref[k] for k in range(4)]               # (W, 4W) each, reused

    for t in range(th):                                  # static unroll; all 2-D
        y = jnp.dot(wmat, x_ref[:, t, :].astype(MATMUL_DTYPE),
                    preferred_element_type=jnp.float32) + shift       # (Cout, W)
        code_t = codes[:, t, :]                                        # (Cout, W)
        row = jnp.zeros((y.shape[0], e_ref.shape[-1]), jnp.float32)   # (Cout, 4W)
        for k in range(4):
            v = jnp.where(code_t == k, y, 0.0)
            row = row + jnp.dot(v, e_mats[k], preferred_element_type=jnp.float32)
        o_ref[:, t, :] = row.astype(o_ref.dtype)          # contiguous, lane-dense


def _make_expand(width, dtype=jnp.float32):
    """One-hot placement matrices: e[2dh+dw, w, 2W*dh + 2w + dw] = 1."""
    w_idx = jnp.arange(width, dtype=jnp.int32)
    cols = jnp.stack([2 * width * dh + 2 * w_idx + dw
                      for dh in (0, 1) for dw in (0, 1)], axis=0)      # (4, W)
    return jax.nn.one_hot(cols, 4 * width, dtype=dtype)                # (4, W, 4W)


# ---------------------------------------------------------------------------
# DecoderOtherPath forward (NCHW in / NCHW out, no wrapper transposes)
# ---------------------------------------------------------------------------
def decoder_other_path(x, params, *, input_channels, output_channels,
                       upsample, pool_indices=None, out_dtype=None,
                       vmem_budget=20 * 1024 * 1024):
    """params: {'conv_w': (Cout, Cin), 'gamma': (Cout,), 'beta': (Cout,)}.
    pool_indices: NCHW int32 (N, Cout, H, W) flat indices into the (2H, 2W)
    map (MaxUnpool2d's input format), or None."""
    if output_channels == input_channels and not upsample:
        return x                                           # identity branch

    N, Cin, H, W = x.shape
    Cout = output_channels
    S = H * W
    w = params['conv_w']
    out_dtype = out_dtype or x.dtype
    x3 = x.reshape(N, Cin, S)                  # free: merges the two minor dims

    # Pass 1: hoisted BN batch statistics; fold the scale into the weight.
    mean, var = _bn_batch_stats(x3, w, vmem_budget)
    scale = params['gamma'] * jax.lax.rsqrt(var + EPS)
    shift = (params['beta'] - mean * scale).reshape(Cout, 1).astype(jnp.float32)
    w_scaled = (w * scale[:, None]).astype(w.dtype)

    if upsample and pool_indices is not None:
        # 2-bit corner code (2*dh + dw) of each max; the int8 stream is 4x
        # smaller than int32 flat indices.
        # TODO(synk): in the full network the encoder's pooling module should
        # emit this code directly instead of flat indices.
        code = (((pool_indices // (2 * W)) % 2) * 2
                + (pool_indices % 2)).astype(jnp.int8)
        expand = _make_expand(W)

        row_bytes = Cin * W * 4 + Cout * W + Cout * 4 * W * 4
        const_bytes = 2 * (expand.size * 4 + w.size * 4 + Cout * 4)
        th = _pick_row_tile(
            H, max(1, (vmem_budget - const_bytes) // (2 * row_bytes)))

        out = pl.pallas_call(
            _conv_affine_unpool_kernel,
            out_shape=jax.ShapeDtypeStruct((N, Cout, H, 4 * W), out_dtype),
            grid=(N, H // th),
            in_specs=[
                pl.BlockSpec((None, Cin, th, W), lambda n, i: (n, 0, i, 0)),
                pl.BlockSpec((Cout, Cin), lambda n, i: (0, 0)),
                pl.BlockSpec((Cout, 1), lambda n, i: (0, 0)),
                pl.BlockSpec((None, Cout, th, W), lambda n, i: (n, 0, i, 0)),
                pl.BlockSpec((4, W, 4 * W), lambda n, i: (0, 0, 0)),
            ],
            out_specs=pl.BlockSpec((None, Cout, th, 4 * W),
                                   lambda n, i: (n, 0, i, 0)),
            compiler_params=pltpu.CompilerParams(
                dimension_semantics=("parallel", "parallel"),
                vmem_limit_bytes=VMEM_LIMIT),
        )(x, w_scaled, shift, code, expand)
        # (N, Cout, H, 4W) -> (N, Cout, 2H, 2W): pure metadata reshape.
        return out.reshape(N, Cout, 2 * H, 2 * W)

    # Conv + BN only (no unpool): flat spatial lane dim, fully parallel grid.
    ts = _pick_lane_tile(S, max(128, vmem_budget // (2 * (Cin + Cout) * 4)))
    out = pl.pallas_call(
        _conv_affine_kernel,
        out_shape=jax.ShapeDtypeStruct((N, Cout, S), out_dtype),
        grid=(N, S // ts),
        in_specs=[pl.BlockSpec((None, Cin, ts), lambda n, i: (n, 0, i)),
                  pl.BlockSpec((Cout, Cin), lambda n, i: (0, 0)),
                  pl.BlockSpec((Cout, 1), lambda n, i: (0, 0))],
        out_specs=pl.BlockSpec((None, Cout, ts), lambda n, i: (n, 0, i)),
        compiler_params=pltpu.CompilerParams(
            dimension_semantics=("parallel", "parallel"),
            vmem_limit_bytes=VMEM_LIMIT),
    )(x3, w_scaled, shift)
    return out.reshape(N, Cout, H, W)


# ---------------------------------------------------------------------------
# Deterministic parameters / synthetic pooling indices
# ---------------------------------------------------------------------------
def init_other_path_params(key, input_channels, output_channels):
    k1, k2, k3 = jax.random.split(key, 3)
    # torch Conv2d(Cin, Cout, 1, bias=False).weight is (Cout, Cin, 1, 1); we
    # keep the squeezed (Cout, Cin) matrix, which the NCHW matmul consumes.
    w = 0.1 * jax.random.normal(k1, (output_channels, input_channels), jnp.float32)
    gamma = 1.0 + 0.1 * jax.random.normal(k2, (output_channels,), jnp.float32)
    beta = 0.1 * jax.random.normal(k3, (output_channels,), jnp.float32)
    return {'conv_w': w, 'gamma': gamma, 'beta': beta}


def make_pool_indices(key, n, c, h, w):
    # Synthetic MaxPool2d(2, 2, return_indices=True) indices: one winner per
    # 2x2 window, flat index into the (2h, 2w) map, NCHW int32.
    # TODO(synk): real indices come from the encoder's pooling_module (an
    # external dependency of this module); they are synthesized here.
    kh, kw = jax.random.split(key)
    dh = jax.random.randint(kh, (n, c, h, w), 0, 2, dtype=jnp.int32)
    dw = jax.random.randint(kw, (n, c, h, w), 0, 2, dtype=jnp.int32)
    row = 2 * jax.lax.broadcasted_iota(jnp.int32, (n, c, h, w), 2) + dh
    col = 2 * jax.lax.broadcasted_iota(jnp.int32, (n, c, h, w), 3) + dw
    return row * (2 * w) + col


# ---------------------------------------------------------------------------
# Pure-JAX reference (for the in-script sanity check)
# ---------------------------------------------------------------------------
def _ref_other_path(x, p, cin, cout, upsample, idx=None):
    if cout == cin and not upsample:
        return x
    y = jnp.einsum('oc,nchw->nohw', p['conv_w'], x)
    m = jnp.mean(y, axis=(0, 2, 3), keepdims=True)
    v = jnp.mean((y - m) ** 2, axis=(0, 2, 3), keepdims=True)
    g = p['gamma'].reshape(1, -1, 1, 1)
    b = p['beta'].reshape(1, -1, 1, 1)
    y = (y - m) * jax.lax.rsqrt(v + EPS) * g + b
    if upsample and idx is not None:
        n, c, h, w = y.shape
        out = jnp.zeros((n, c, 2 * h, 2 * w), y.dtype)
        rows = idx // (2 * w)
        cols = idx % (2 * w)
        ni = jax.lax.broadcasted_iota(jnp.int32, y.shape, 0)
        ci = jax.lax.broadcasted_iota(jnp.int32, y.shape, 1)
        y = out.at[ni, ci, rows, cols].set(y)
    return y


if __name__ == "__main__":
    key = jax.random.PRNGKey(0)
    kx, kp, ki, kx2, kp2 = jax.random.split(key, 5)

    # Case 1: channel reduction + upsample + MaxUnpool (the interesting branch).
    N, Cin, Cout, H, W = 2, 32, 16, 16, 16
    x = jax.random.normal(kx, (N, Cin, H, W), jnp.float32)           # NCHW
    params = init_other_path_params(kp, Cin, Cout)
    idx = make_pool_indices(ki, N, Cout, H, W)
    y = decoder_other_path(x, params, input_channels=Cin, output_channels=Cout,
                           upsample=True, pool_indices=idx)
    jax.block_until_ready(y)
    assert y.shape == (N, Cout, 2 * H, 2 * W), y.shape
    y_ref = _ref_other_path(x, params, Cin, Cout, True, idx)
    err1 = float(jnp.max(jnp.abs(y - y_ref)))
    assert err1 < 5e-3, f"upsample branch mismatch: {err1}"

    # Case 2: channel change, no upsample (conv + BN only).
    x2 = jax.random.normal(kx2, (N, 16, H, W), jnp.float32)
    params2 = init_other_path_params(kp2, 16, 32)
    y2 = decoder_other_path(x2, params2, input_channels=16, output_channels=32,
                            upsample=False)
    jax.block_until_ready(y2)
    assert y2.shape == (N, 32, H, W), y2.shape
    y2_ref = _ref_other_path(x2, params2, 16, 32, False)
    err2 = float(jnp.max(jnp.abs(y2 - y2_ref)))
    assert err2 < 5e-3, f"conv-bn branch mismatch: {err2}"

    # Case 3: identity passthrough (out == in channels, no upsample).
    y3 = decoder_other_path(x2, None, input_channels=16, output_channels=16,
                            upsample=False)
    assert y3.shape == x2.shape

    print("KERNEL_OK")
</pallas_src>

<mosaic_0001>
module attributes {stable_mosaic.version = 11 : i64} {
  func.func @_stats_kernel(%arg0: i32, %arg1: i32, %arg2: memref<1x32x256xf32, #tpu.memory_space<vmem>>, %arg3: memref<16x32xf32, #tpu.memory_space<vmem>>, %arg4: memref<1x16x1xf32, #tpu.memory_space<vmem>>, %arg5: memref<1x16x1xf32, #tpu.memory_space<vmem>>) attributes {dimension_semantics = [#tpu.dimension_semantics<parallel>, #tpu.dimension_semantics<arbitrary>], iteration_bounds = array<i64: 2, 1>, scalar_prefetch = 0 : i64, scratch_operands = 0 : i64, tpu.core_type = #tpu.core_type<tc>, window_params = [{transform_indices = @transform_0, window_bounds = array<i64: 1, 32, 256>}, {pipeline_mode = #tpu.pipeline_mode<synchronous>, transform_indices = @transform_1, window_bounds = array<i64: 16, 32>}, {transform_indices = @transform_2, window_bounds = array<i64: 1, 16, 1>}, {transform_indices = @transform_3, window_bounds = array<i64: 1, 16, 1>}]} {
    %c0_i32 = arith.constant 0 : i32
    %0 = arith.cmpi eq, %arg1, %c0_i32 : i32
    %1 = arith.extui %0 : i1 to i32
    %c0_i32_0 = arith.constant 0 : i32
    %2 = arith.cmpi ne, %1, %c0_i32_0 : i32
    scf.if %2 {
      %cst_19 = arith.constant 0.000000e+00 : f32
      %24 = vector.broadcast %cst_19 : f32 to vector<16x1xf32>
      %c0_20 = arith.constant 0 : index
      %c0_21 = arith.constant 0 : index
      %c0_22 = arith.constant 0 : index
      %25 = vector.load %arg4[%c0_20, %c0_21, %c0_22] : memref<1x16x1xf32, #tpu.memory_space<vmem>>, vector<1x16x1xf32>
      %26 = vector.shape_cast %25 : vector<1x16x1xf32> to vector<16x1xf32>
      %27 = vector.shape_cast %24 : vector<16x1xf32> to vector<1x16x1xf32>
      tpu.vector_store %arg4[%c0_20, %c0_21, %c0_22], %27 {strides = array<i32>} : memref<1x16x1xf32, #tpu.memory_space<vmem>>, vector<1x16x1xf32>,
      %cst_23 = arith.constant 0.000000e+00 : f32
      %28 = vector.broadcast %cst_23 : f32 to vector<16x1xf32>
      %c0_24 = arith.constant 0 : index
      %c0_25 = arith.constant 0 : index
      %c0_26 = arith.constant 0 : index
      %29 = vector.load %arg5[%c0_24, %c0_25, %c0_26] : memref<1x16x1xf32, #tpu.memory_space<vmem>>, vector<1x16x1xf32>
      %30 = vector.shape_cast %29 : vector<1x16x1xf32> to vector<16x1xf32>
      %31 = vector.shape_cast %28 : vector<16x1xf32> to vector<1x16x1xf32>
      tpu.vector_store %arg5[%c0_24, %c0_25, %c0_26], %31 {strides = array<i32>} : memref<1x16x1xf32, #tpu.memory_space<vmem>>, vector<1x16x1xf32>,
    } else {
    }
    %c0 = arith.constant 0 : index
    %c0_1 = arith.constant 0 : index
    %3 = vector.load %arg3[%c0, %c0_1] : memref<16x32xf32, #tpu.memory_space<vmem>>, vector<16x32xf32>
    %c0_2 = arith.constant 0 : index
    %c0_3 = arith.constant 0 : index
    %c0_4 = arith.constant 0 : index
    %4 = vector.load %arg2[%c0_2, %c0_3, %c0_4] : memref<1x32x256xf32, #tpu.memory_space<vmem>>, vector<1x32x256xf32>
    %5 = vector.shape_cast %4 : vector<1x32x256xf32> to vector<32x256xf32>
    %cst = arith.constant dense<0.000000e+00> : vector<16x256xf32>
    %6 = tpu.matmul %3, %5, %cst {dimension_numbers = #tpu.dot_dimension_numbers<[1], [0], [0], [1], [0, 0, 1, 1], [], []>} : vector<16x32xf32>, vector<32x256xf32>, vector<16x256xf32> -> vector<16x256xf32>
    %c0_5 = arith.constant 0 : index
    %c0_6 = arith.constant 0 : index
    %c0_7 = arith.constant 0 : index
    %7 = vector.load %arg4[%c0_5, %c0_6, %c0_7] : memref<1x16x1xf32, #tpu.memory_space<vmem>>, vector<1x16x1xf32>
    %8 = vector.shape_cast %7 : vector<1x16x1xf32> to vector<16x1xf32>
    %cst_8 = arith.constant dense<0.000000e+00> : vector<16xf32>
    %9 = vector.multi_reduction <add>, %6, %cst_8 [1] : vector<16x256xf32> to vector<16xf32>
    %10 = vector.shape_cast %9 : vector<16xf32> to vector<16x1xf32>
    %11 = arith.addf %8, %10 : vector<16x1xf32>
    %c0_9 = arith.constant 0 : index
    %c0_10 = arith.constant 0 : index
    %c0_11 = arith.constant 0 : index
    %12 = vector.load %arg4[%c0_9, %c0_10, %c0_11] : memref<1x16x1xf32, #tpu.memory_space<vmem>>, vector<1x16x1xf32>
    %13 = vector.shape_cast %12 : vector<1x16x1xf32> to vector<16x1xf32>
    %14 = vector.shape_cast %11 : vector<16x1xf32> to vector<1x16x1xf32>
    tpu.vector_store %arg4[%c0_9, %c0_10, %c0_11], %14 {strides = array<i32>} : memref<1x16x1xf32, #tpu.memory_space<vmem>>, vector<1x16x1xf32>,
    %c0_12 = arith.constant 0 : index
    %c0_13 = arith.constant 0 : index
    %c0_14 = arith.constant 0 : index
    %15 = vector.load %arg5[%c0_12, %c0_13, %c0_14] : memref<1x16x1xf32, #tpu.memory_space<vmem>>, vector<1x16x1xf32>
    %16 = vector.shape_cast %15 : vector<1x16x1xf32> to vector<16x1xf32>
    %17 = arith.mulf %6, %6 : vector<16x256xf32>
    %cst_15 = arith.constant dense<0.000000e+00> : vector<16xf32>
    %18 = vector.multi_reduction <add>, %17, %cst_15 [1] : vector<16x256xf32> to vector<16xf32>
    %19 = vector.shape_cast %18 : vector<16xf32> to vector<16x1xf32>
    %20 = arith.addf %16, %19 : vector<16x1xf32>
    %c0_16 = arith.constant 0 : index
    %c0_17 = arith.constant 0 : index
    %c0_18 = arith.constant 0 : index
    %21 = vector.load %arg5[%c0_16, %c0_17, %c0_18] : memref<1x16x1xf32, #tpu.memory_space<vmem>>, vector<1x16x1xf32>
    %22 = vector.shape_cast %21 : vector<1x16x1xf32> to vector<16x1xf32>
    %23 = vector.shape_cast %20 : vector<16x1xf32> to vector<1x16x1xf32>
    tpu.vector_store %arg5[%c0_16, %c0_17, %c0_18], %23 {strides = array<i32>} : memref<1x16x1xf32, #tpu.memory_space<vmem>>, vector<1x16x1xf32>,
    return
  }
  func.func @transform_0(%arg0: i32, %arg1: i32) -> (i32, i32, i32) {
    %c0_i32 = arith.constant 0 : i32
    %c0_i32_0 = arith.constant 0 : i32
    return %arg0, %c0_i32, %arg1 : i32, i32, i32
  }
  func.func @transform_1(%arg0: i32, %arg1: i32) -> (i32, i32) {
    %c0_i32 = arith.constant 0 : i32
    %c0_i32_0 = arith.constant 0 : i32
    %c0_i32_1 = arith.constant 0 : i32
    return %c0_i32, %c0_i32_0 : i32, i32
  }
  func.func @transform_2(%arg0: i32, %arg1: i32) -> (i32, i32, i32) {
    %c0_i32 = arith.constant 0 : i32
    %c0_i32_0 = arith.constant 0 : i32
    %c0_i32_1 = arith.constant 0 : i32
    return %arg0, %c0_i32, %c0_i32_0 : i32, i32, i32
  }
  func.func @transform_3(%arg0: i32, %arg1: i32) -> (i32, i32, i32) {
    %c0_i32 = arith.constant 0 : i32
    %c0_i32_0 = arith.constant 0 : i32
    %c0_i32_1 = arith.constant 0 : i32
    return %arg0, %c0_i32, %c0_i32_0 : i32, i32, i32
  }
}

</mosaic_0001>

<llo_original>
// kernel: tpu_custom_call.1
$region0: #{tpu_custom_call.1}
  #allocation0 [shape = 'u32[]', space=smem, size = 0x4, offset = 0x4, fixed_abs, tag = 'smem constant byte address 0x4 - core index']
  #allocation1 [shape = 'u32[144,128]{1,0:T(1,128)}', space=vmem, size = 0x12000, scoped, tag = 'internal scratch']
  %s0 = inlined_call_operand.hbm [shape: f32[2,32,256], index: 0, kind: input, shape index: {}]
  %s1 = inlined_call_operand.hbm [shape: f32[16,32], index: 1, kind: input, shape index: {}]
  %s2 = inlined_call_operand.vmem [shape: f32[2,16,1], index: 2, kind: output, shape index: {0}]
  %s3 = inlined_call_operand.vmem [shape: f32[2,16,1], index: 3, kind: output, shape index: {1}]
  %4 = xla_tuple %s2, %s3
  %s5 = sld [smem:[#allocation0]]
  $region61: #{tpu_custom_call.1} parent=0
    _
  %s7 = ssub.s32 1, %s5
  %s8 = scalar_select 0, %s7, %s5
  $region1: #{tpu_custom_call.1} parent=0
    #allocation2 [shape = 'u8[65536]{0}', space=vmem, size = 0x10000, scoped, tag = 'input window, operand 0']
    #allocation3 [shape = 's32[2]{0}', space=sflag, size = 0x8, scoped, tag = 'scoped memory for tpu_custom_call.1']
    #allocation4 [shape = 'u8[8192]{0}', space=vmem, size = 0x2000, scoped, tag = 'input window, operand 1, single buffered']
    #allocation5 [shape = 's32[1]{0}', space=sflag, size = 0x4, scoped, tag = 'scoped memory for tpu_custom_call.1']
    %9 = vsyncpa [#allocation3], 0
    %s10 = scalar_lea.sflag [#allocation3], 1
    %11 = vsyncpa %s10, 0
    %12 = vsyncpa [#allocation5], 0
    loop: start=0, step=1, limit=4
    $region2: #{tpu_custom_call.1} parent=1 // loop_pre_header
      _
    $region3: #{tpu_custom_call.1} parent=1 // loop_header
      %s14 = sphi 0, %s18
      %p15 = scmp.ge.s32.totalorder %s14, 4
      %s21 = sphi 0, %s33
      %s22 = sphi 0, %s29
      %s23 = sphi 0, %s21
      %s24 = sphi 0, %s22
      %s25 = sphi 0, %s23
      %s26 = sphi 0, %s24
      %s38 = sphi 0, %s40
      %s41 = sphi 0, %s38
      %s42 = sphi 0, %s41
      %s58 = sphi 0, %s42
      %s62 = sphi 0, %s62
      %s64 = sphi 0, %s62
      %s65 = sphi 0, %s64
      %s79 = sphi 0, %s65
      %s85 = sphi 0, %s87
      %s88 = sphi 0, %s85
      %s89 = sphi 0, %s88
      %s105 = sphi 0, %s89
      %s111 = sphi 0, %s113
      %s114 = sphi 0, %s111
      %s115 = sphi 0, %s114
      %s131 = sphi 0, %s115
    $region4: #{tpu_custom_call.1} parent=1 // loop_header_branch
      %17 = sbr.rel (%p15) target = $region8
    $region5: #{tpu_custom_call.1} parent=1 // loop_body
      %s19 = ssub.s32 %s14, 1
      %s20 = ssub.s32 %s14, 2
      %s27 = sadd.s32 1, %s22
      %p28 = scmp.ge.s32.totalorder %s27, 1
      %s29 = scalar_select %p28, 0, %s27
      %s30 = sadd.s32 1, %s21
      %s31 = scalar_select %p28, %s30, %s21
      %p32 = scmp.ge.s32.totalorder %s31, 2
      %s33 = scalar_select %p32, 0, %s31
      %s34 = ssub.s32 %s21, %s33
      %s35 = ssub.s32 %s22, %s29
      %s36 = sor.u32 %s34, %s35
      %p37 = scmp.eq.s32.totalorder %s36, 0
      %s39 = sadd.s32 %s38, 1
      %s40 = scalar_select %p37, %s38, %s39
      %p43 = pneg %p37
      %p44 = scmp.eq.s32.totalorder %s14, 1
      %p45 = por %p43, %p44
      %p46 = scmp.ne.s32.totalorder %s38, %s41
      %p47 = scmp.eq.s32.totalorder %s14, 0
      %p48 = por %p46, %p47
      %p49 = scmp.ne.s32.totalorder %s38, %s41
      %p50 = scmp.eq.s32.totalorder %s19, 1
      %p51 = por %p49, %p50
      %p52 = scmp.ne.s32.totalorder %s41, %s42
      %p53 = scmp.eq.s32.totalorder %s19, 0
      %p54 = por %p52, %p53
      %p55 = scmp.ne.s32.totalorder %s41, %s42
      %p56 = scmp.eq.s32.totalorder %s20, 1
      %p57 = por %p55, %p56
      %p59 = scmp.ne.s32.totalorder %s42, %s58
      %p60 = scmp.eq.s32.totalorder %s20, 0
      %p61 = por %p59, %p60
      %s63 = sadd.s32 %s62, 1
      %p66 = scmp.eq.s32.totalorder %s14, 1
      %p67 = scmp.ne.s32.totalorder %s62, %s64
      %p68 = scmp.eq.s32.totalorder %s14, 0
      %p69 = por %p67, %p68
      %p70 = scmp.ne.s32.totalorder %s62, %s64
      %p71 = scmp.eq.s32.totalorder %s19, 1
      %p72 = por %p70, %p71
      %p73 = scmp.ne.s32.totalorder %s64, %s65
      %p74 = scmp.eq.s32.totalorder %s19, 0
      %p75 = por %p73, %p74
      %p76 = scmp.ne.s32.totalorder %s64, %s65
      %p77 = scmp.eq.s32.totalorder %s20, 1
      %p78 = por %p76, %p77
      %p80 = scmp.ne.s32.totalorder %s65, %s79
      %p81 = scmp.eq.s32.totalorder %s20, 0
      %p82 = por %p80, %p81
      %s83 = ssub.s32 %s21, %s33
      %p84 = scmp.eq.s32.totalorder %s83, 0
      %s86 = sadd.s32 %s85, 1
      %s87 = scalar_select %p84, %s85, %s86
      %p90 = pneg %p84
      %p91 = scmp.eq.s32.totalorder %s14, 1
      %p92 = por %p90, %p91
      %p93 = scmp.ne.s32.totalorder %s85, %s88
      %p94 = scmp.eq.s32.totalorder %s14, 0
      %p95 = por %p93, %p94
      %p96 = scmp.ne.s32.totalorder %s85, %s88
      %p97 = scmp.eq.s32.totalorder %s19, 1
      %p98 = por %p96, %p97
      %p99 = scmp.ne.s32.totalorder %s88, %s89
      %p100 = scmp.eq.s32.totalorder %s19, 0
      %p101 = por %p99, %p100
      %p102 = scmp.ne.s32.totalorder %s88, %s89
      %p103 = scmp.eq.s32.totalorder %s20, 1
      %p104 = por %p102, %p103
      %p106 = scmp.ne.s32.totalorder %s89, %s105
      %p107 = scmp.eq.s32.totalorder %s20, 0
      %p108 = por %p106, %p107
      %s109 = ssub.s32 %s21, %s33
      %p110 = scmp.eq.s32.totalorder %s109, 0
      %s112 = sadd.s32 %s111, 1
      %s113 = scalar_select %p110, %s111, %s112
      %p116 = pneg %p110
      %p117 = scmp.eq.s32.totalorder %s14, 1
      %p118 = por %p116, %p117
      %p119 = scmp.ne.s32.totalorder %s111, %s114
      %p120 = scmp.eq.s32.totalorder %s14, 0
      %p121 = por %p119, %p120
      %p122 = scmp.ne.s32.totalorder %s111, %s114
      %p123 = scmp.eq.s32.totalorder %s19, 1
      %p124 = por %p122, %p123
      %p125 = scmp.ne.s32.totalorder %s114, %s115
      %p126 = scmp.eq.s32.totalorder %s19, 0
      %p127 = por %p125, %p126
      %p128 = scmp.ne.s32.totalorder %s114, %s115
      %p129 = scmp.eq.s32.totalorder %s20, 1
      %p130 = por %p128, %p129
      %p132 = scmp.ne.s32.totalorder %s115, %s131
      %p133 = scmp.eq.s32.totalorder %s20, 0
      %p134 = por %p132, %p133
      %p135 = scmp.le.s32.totalorder 1, %s14
      %p136 = scmp.lt.s32.totalorder %s14, 3
      %p137 = pnand %p135, %p136
      %p138 = pneg %p137
      // Predicated region
      $region9: #{tpu_custom_call.1} parent=5 // pred_check
        _
      $region10: #{tpu_custom_call.1} parent=5 // pred_check_branch
        %140 = sbr.rel (%p137) target = $region12
      $region11: #{tpu_custom_call.1} parent=5 // pred_region
        %s141 = ssub.s32 %s14, 1
        // Predicated region
        $region13: #{tpu_custom_call.1} parent=11 // pred_check
          %p142 = pneg %p75
        $region14: #{tpu_custom_call.1} parent=11 // pred_check_branch
          %144 = sbr.rel (%p142) target = $region16
        $region15: #{tpu_custom_call.1} parent=11 // pred_region
          %s146 = ssub.s32 256, 256
          %147 = vsyncadd [#allocation5], %s146
          %s148 = sshll.u32 [#allocation4], 4
          %s149 = int_to_ptr.vmem [resolvable:$true] %s148
          %154 = dma.hbm_to_vmem [thread:$0]  %s1, 256, %s149, [#allocation5], 128, 128, 8
        $region16: #{tpu_custom_call.1} parent=11 // pred_fallthru
          _
      $region12: #{tpu_custom_call.1} parent=5 // pred_fallthru
        _
      %p155 = scmp.lt.s32.totalorder %s14, 2
      // Predicated region
      $region17: #{tpu_custom_call.1} parent=5 // pred_check
        %p156 = pneg %p155
      $region18: #{tpu_custom_call.1} parent=5 // pred_check_branch
        %158 = sbr.rel (%p156) target = $region20
      $region19: #{tpu_custom_call.1} parent=5 // pred_region
        // Predicated region
        $region21: #{tpu_custom_call.1} parent=19 // pred_check
          %p159 = pneg %p48
        $region22: #{tpu_custom_call.1} parent=19 // pred_check_branch
          %161 = sbr.rel (%p159) target = $region24
        $region23: #{tpu_custom_call.1} parent=19 // pred_region
          %s162 = sand.u32 %s38, 1
          %s163 = scalar_lea.sflag [#allocation3], %s162
          %s164 = sand.u32 %s38, 1
          %s165 = smul.addr %s164, 64
          %s166 = scalar_lea.vmem [#allocation2], %s165
          %s167 = smul.u32 2, %s22
          %s169 = ssub.s32 1024, 1024
          %170 = vsyncadd %s163, %s169
          %s171 = smul.addr %s21, 8
          %s172 = sadd.s32 %s167, %s171
          %s173 = smul.addr %s172, 128
          %s174 = scalar_lea.hbm %s0, %s173
          %s175 = sshll.u32 %s166, 4
          %s176 = int_to_ptr.vmem [resolvable:$true] %s175
          %181 = dma.hbm_to_vmem [thread:$0]  %s174, 1024, %s176, %s163, 256, 256, 16
        $region24: #{tpu_custom_call.1} parent=19 // pred_fallthru
          _
      $region20: #{tpu_custom_call.1} parent=5 // pred_fallthru
        _
      %p182 = scmp.le.s32.totalorder 1, %s14
      %p183 = scmp.lt.s32.totalorder %s14, 3
      %p184 = pnand %p182, %p183
      %p185 = pneg %p184
      // Predicated region
      $region25: #{tpu_custom_call.1} parent=5 // pred_check
        _
      $region26: #{tpu_custom_call.1} parent=5 // pred_check_branch
        %187 = sbr.rel (%p184) target = $region28
      $region27: #{tpu_custom_call.1} parent=5 // pred_region
        %s188 = ssub.s32 %s14, 1
        %s189 = sand.u32 %s41, 1
        %s190 = scalar_lea.sflag [#allocation3], %s189
        %s191 = sand.u32 %s41, 1
        %s192 = smul.addr %s191, 64
        %s193 = scalar_lea.vmem [#allocation2], %s192
        // Predicated region
        $region29: #{tpu_custom_call.1} parent=27 // pred_check
          %p194 = pneg %p54
        $region30: #{tpu_custom_call.1} parent=27 // pred_check_branch
          %196 = sbr.rel (%p194) target = $region32
        $region31: #{tpu_custom_call.1} parent=27 // pred_region
          %197 = dma.done %s190, 1024
        $region32: #{tpu_custom_call.1} parent=27 // pred_fallthru
          _
        // Predicated region
        $region33: #{tpu_custom_call.1} parent=27 // pred_check
          %p198 = pneg %p75
        $region34: #{tpu_custom_call.1} parent=27 // pred_check_branch
          %200 = sbr.rel (%p198) target = $region36
        $region35: #{tpu_custom_call.1} parent=27 // pred_region
          %201 = dma.done [#allocation5], 256
        $region36: #{tpu_custom_call.1} parent=27 // pred_fallthru
          _
        %s202 = sand.u32 %s41, 1
        %s203 = scalar_lea.sflag [#allocation3], %s202
        %s204 = sand.u32 %s41, 1
        %s205 = smul.addr %s204, 64
        %s206 = scalar_lea.vmem [#allocation2], %s205
        %p207 = pneg %p54
        %p208 = pneg %p51
        %p209 = pneg %p75
        %p210 = pneg %p72
        %p211 = pneg %p101
        %p212 = pneg %p98
        %p213 = scmp.lt.s32.totalorder %s23, 1
        %s214 = scalar_select %p213, %s23, 1
        %s215 = smul.addr %s214, 2
        %s216 = smul.addr %s215, 8
        %s217 = scalar_lea.vmem %s2, %s216
        %p218 = pneg %p127
        %p219 = pneg %p124
        %p220 = scmp.lt.s32.totalorder %s23, 1
        %s221 = scalar_select %p220, %s23, 1
        %s222 = smul.addr %s221, 2
        %s223 = smul.addr %s222, 8
        %s224 = scalar_lea.vmem %s3, %s223
        %s225 = smul.u32 2, %s24
        %p226 = scmp.lt.s32.totalorder %s23, 1
        %s227 = scalar_select %p226, %s23, 1
        %s228 = smul.addr %s227, 2
        %s229 = smul.addr %s228, 8
        %s230 = scalar_lea.vmem %s2, %s229
        %p231 = scmp.lt.s32.totalorder %s23, 1
        %s232 = scalar_select %p231, %s23, 1
        %s233 = smul.addr %s232, 2
        %s234 = smul.addr %s233, 8
        %s235 = scalar_lea.vmem %s3, %s234
        %p236 = scmp.eq.s32.totalorder %s24, 0
        // Predicated region
        $region37: #{tpu_custom_call.1} parent=27 // pred_check
          %p237 = pneg %p236
        $region38: #{tpu_custom_call.1} parent=27 // pred_check_branch
          %239 = sbr.rel (%p237) target = $region40
        $region39: #{tpu_custom_call.1} parent=27 // pred_region
          %vm240 = vcmask 7168
          %241 = vst.msk [vmem:[%s230] sm:$0xff] %vm240, 0.0
          %242 = vst.msk [vmem:[%s230 + $0x8] sm:$0xff] %vm240, 0.0
          %243 = vst.msk [vmem:[%s235] sm:$0xff] %vm240, 0.0
          %244 = vst.msk [vmem:[%s235 + $0x8] sm:$0xff] %vm240, 0.0
        $region40: #{tpu_custom_call.1} parent=27 // pred_fallthru
          _
        %v245 = vld [vmem:[#allocation4] sm:$0xff]
        %v246 = vld [vmem:[#allocation4 + $0x8] sm:$0xff]
        %v247 = vld [vmem:[%s193] sm:$0xff]
        %v248 = vld [vmem:[%s193 + $0x8] sm:$0xff]
        %v249 = vld [vmem:[%s193 + $0x10] sm:$0xff]
        %v250 = vld [vmem:[%s193 + $0x18] sm:$0xff]
        %v251 = vld [vmem:[%s193 + $0x20] sm:$0xff]
        %v252 = vld [vmem:[%s193 + $0x28] sm:$0xff]
        %v253 = vld [vmem:[%s193 + $0x30] sm:$0xff]
        %v254 = vld [vmem:[%s193 + $0x38] sm:$0xff]
        %vm255 = vcmask 261120
        %v257 = vsel %vm255, %v245, 0
        %v260 = vsel %vm255, %v246, 0
        %262 = vmatprep.subr.mxu0 %v248
        %263 = vmatpush1.msra.mxu0 %v247
        %264 = vmatprep.subr.mxu0 %v250
        %265 = vmatpush1.msra.mxu0 %v249
        %266 = vmatprep.subr.mxu0 %v252
        %267 = vmatpush1.msra.mxu0 %v251
        %268 = vmatprep.subr.mxu0 %v254
        %269 = vmatpush1.msra.mxu0 %v253
        %270 = vmatprep.subr.mxu0 0.0
        %271 = vmatpush1.msra.mxu0 0.0
        %272 = vmatprep.subr.mxu0 0.0
        %273 = vmatpush1.msra.mxu0 0.0
        %274 = vmatprep.subr.mxu0 0.0
        %275 = vmatpush1.msra.mxu0 0.0
        %276 = vmatprep.subr.mxu0 0.0
        %277 = vmatpush1.msra.mxu0 0.0
        %278 = vmatprep.subr.mxu0 0.0
        %279 = vmatpush1.msra.mxu0 0.0
        %280 = vmatprep.subr.mxu0 0.0
        %281 = vmatpush1.msra.mxu0 0.0
        %282 = vmatprep.subr.mxu0 0.0
        %283 = vmatpush1.msra.mxu0 0.0
        %284 = vmatprep.subr.mxu0 0.0
        %285 = vmatpush1.msra.mxu0 0.0
        %286 = vmatprep.subr.mxu0 0.0
        %287 = vmatpush1.msra.mxu0 0.0
        %288 = vmatprep.subr.mxu0 0.0
        %289 = vmatpush1.msra.mxu0 0.0
        %290 = vmatprep.subr.mxu0 0.0
        %291 = vmatpush1.msra.mxu0 0.0
        %292 = vmatprep.subr.mxu0 0.0
        %293 = vmatpush1.msra.mxu0 0.0
        %294 = vmatprep.subr.mxu0 0.0
        %295 = vmatpush1.msra.mxu0 0.0
        %296 = vmatprep.subr.mxu0 0.0
        %297 = vmatpush1.msra.mxu0 0.0
        %298 = vmatprep.subr.mxu0 0.0
        %299 = vmatpush1.msra.mxu0 0.0
        %300 = vmatprep.subr.mxu0 0.0
        %301 = vmatpush1.msra.mxu0 0.0
        %302 = vmatprep.subr.mxu0 0.0
        %303 = vmatpush1.msra.mxu0 0.0
        %304 = vmatprep.subr.mxu0 0.0
        %305 = vmatpush1.msra.mxu0 0.0
        %306 = vmatprep.subr.mxu0 0.0
        %307 = vmatpush1.msra.mxu0 0.0
        %308 = vmatprep.subr.mxu0 0.0
        %309 = vmatpush1.msra.mxu0 0.0
        %310 = vmatprep.subr.mxu0 0.0
        %311 = vmatpush1.msra.mxu0 0.0
        %312 = vmatprep.subr.mxu0 0.0
        %313 = vmatpush1.msra.mxu0 0.0
        %314 = vmatprep.subr.mxu0 0.0
        %315 = vmatpush1.msra.mxu0 0.0
        %316 = vmatprep.subr.mxu0 0.0
        %317 = vmatpush1.msra.mxu0 0.0
        %318 = vmatprep.subr.mxu0 0.0
        %319 = vmatpush1.msra.mxu0 0.0
        %320 = vmatprep.subr.mxu0 0.0
        %321 = vmatpush1.msra.mxu0 0.0
        %322 = vmatprep.subr.mxu0 0.0
        %323 = vmatpush1.msra.mxu0 0.0
        %324 = vmatprep.subr.mxu0 0.0
        %325 = vmatpush1.msra.mxu0 0.0
        %326 = vmatprep.mubr.f32.mxu0 0.0
        %327 = vmatmul.mubr.f32.gmra.mrb[0].mxu0 %v257
        %v328 = vpop.f32.mrb[0].mxu0
        %v329 = vadd.f32 0.0, %v328
        %v330 = vpop.f32.mrb[0].mxu0
        %v331 = vadd.f32 0.0, %v330
        %332 = vmatprep.mubr.f32.mxu0 0.0
        %333 = vmatmul.mubr.f32.gmra.mrb[0].mxu0 %v260
        %v334 = vpop.f32.mrb[0].mxu0
        %v335 = vadd.f32 0.0, %v334
        %v336 = vpop.f32.mrb[0].mxu0
        %v337 = vadd.f32 0.0, %v336
        %338 = vdwg.mxu0
        %v339 = vld [vmem:[%s230] sm:$0xff]
        %v340 = vld [vmem:[%s230 + $0x8] sm:$0xff]
        %v341 = vadd.f32 %v329, %v331
        %342 = vadd.xlane.f32.xlu0 %v341
        %v343 = vpop.xlane.xlu0 %342
        %v344 = vadd.f32 %v335, %v337
        %345 = vadd.xlane.f32.xlu0 %v344
        %v346 = vpop.xlane.xlu0 %345
        %v347 = vadd.f32 %v339, %v343
        %v348 = vadd.f32 %v340, %v346
        %vm349 = vcmask 7168
        %350 = vst.msk [vmem:[%s230] sm:$0xff] %vm349, %v347
        %351 = vst.msk [vmem:[%s230 + $0x8] sm:$0xff] %vm349, %v348
        %v352 = vld [vmem:[%s235] sm:$0xff]
        %v353 = vld [vmem:[%s235 + $0x8] sm:$0xff]
        %v354 = vmul.f32 %v329, %v329
        %v355 = vmul.f32 %v331, %v331
        %v356 = vmul.f32 %v335, %v335
        %v357 = vmul.f32 %v337, %v337
        %v358 = vadd.f32 %v354, %v355
        %359 = vadd.xlane.f32.xlu0 %v358
        %v360 = vpop.xlane.xlu0 %359
        %v361 = vadd.f32 %v356, %v357
        %362 = vadd.xlane.f32.xlu0 %v361
        %v363 = vpop.xlane.xlu0 %362
        %v364 = vadd.f32 %v352, %v360
        %v365 = vadd.f32 %v353, %v363
        %366 = vst.msk [vmem:[%s235] sm:$0xff] %vm349, %v364
        %367 = vst.msk [vmem:[%s235 + $0x8] sm:$0xff] %vm349, %v365
        %p368 = scmp.lt.s32.totalorder %s23, 1
        %s369 = scalar_select %p368, %s23, 1
        %s370 = smul.addr %s369, 2
        %s371 = smul.addr %s370, 8
        %s372 = scalar_lea.vmem %s2, %s371
        %p373 = scmp.lt.s32.totalorder %s23, 1
        %s374 = scalar_select %p373, %s23, 1
        %s375 = smul.addr %s374, 2
        %s376 = smul.addr %s375, 8
        %s377 = scalar_lea.vmem %s3, %s376
        // Predicated region
        $region41: #{tpu_custom_call.1} parent=27 // pred_check
          %p378 = pneg %p98
        $region42: #{tpu_custom_call.1} parent=27 // pred_check_branch
          %380 = sbr.rel (%p378) target = $region44
        $region43: #{tpu_custom_call.1} parent=27 // pred_region
          _
        $region44: #{tpu_custom_call.1} parent=27 // pred_fallthru
          _
        // Predicated region
        $region45: #{tpu_custom_call.1} parent=27 // pred_check
          %p381 = pneg %p124
        $region46: #{tpu_custom_call.1} parent=27 // pred_check_branch
          %383 = sbr.rel (%p381) target = $region48
        $region47: #{tpu_custom_call.1} parent=27 // pred_region
          _
        $region48: #{tpu_custom_call.1} parent=27 // pred_fallthru
          _
      $region28: #{tpu_custom_call.1} parent=5 // pred_fallthru
        _
      %p384 = scmp.le.s32.totalorder 2, %s14
      // Predicated region
      $region49: #{tpu_custom_call.1} parent=5 // pred_check
        %p385 = pneg %p384
      $region50: #{tpu_custom_call.1} parent=5 // pred_check_branch
        %387 = sbr.rel (%p385) target = $region52
      $region51: #{tpu_custom_call.1} parent=5 // pred_region
        %s388 = ssub.s32 %s14, 2
        // Predicated region
        $region53: #{tpu_custom_call.1} parent=51 // pred_check
          %p389 = pneg %p104
        $region54: #{tpu_custom_call.1} parent=51 // pred_check_branch
          %391 = sbr.rel (%p389) target = $region56
        $region55: #{tpu_custom_call.1} parent=51 // pred_region
          %p392 = scmp.lt.s32.totalorder %s25, 1
          %s393 = scalar_select %p392, %s25, 1
          %s394 = smul.addr %s393, 2
          %s395 = smul.addr %s394, 8
          %s396 = scalar_lea.vmem %s2, %s395
        $region56: #{tpu_custom_call.1} parent=51 // pred_fallthru
          _
        // Predicated region
        $region57: #{tpu_custom_call.1} parent=51 // pred_check
          %p397 = pneg %p130
        $region58: #{tpu_custom_call.1} parent=51 // pred_check_branch
          %399 = sbr.rel (%p397) target = $region60
        $region59: #{tpu_custom_call.1} parent=51 // pred_region
          %p400 = scmp.lt.s32.totalorder %s25, 1
          %s401 = scalar_select %p400, %s25, 1
          %s402 = smul.addr %s401, 2
          %s403 = smul.addr %s402, 8
          %s404 = scalar_lea.vmem %s3, %s403
        $region60: #{tpu_custom_call.1} parent=51 // pred_fallthru
          _
      $region52: #{tpu_custom_call.1} parent=5 // pred_fallthru
        _
    $region6: #{tpu_custom_call.1} parent=1 // loop_footer
      %s18 = sadd.s32 1, %s14
    $region7: #{tpu_custom_call.1} parent=1 // loop_footer_branch
      %13 = sbr.rel target = $region3
    $region8: #{tpu_custom_call.1} parent=1 // loop_exit
      _
    %405 = vsyncpa [#allocation3], 1
    %s406 = scalar_lea.sflag [#allocation3], 1
    %407 = vsyncpa %s406, 1
    %408 = vsyncpa [#allocation5], 1

</llo_original>
